<compile_context>
chip_gen: v5e
topology: v5e:2x2
jax: 0.10.0
libtpu: 0.0.40
codegen_flags: <defaults>
</compile_context>

<pallas_src>
import functools
import math

import jax
import jax.numpy as jnp
from jax.experimental import pallas as pl
from jax.experimental.pallas import tpu as pltpu


def _round_up(x, m):
    return (x + m - 1) // m * m


def _bytes(shape, dtype):
    return math.prod(shape) * jnp.dtype(dtype).itemsize


def _vmem_limit_bytes(block_specs, scratch_bytes=0):
    """Double-buffered pipelined blocks + scratch + margin, clamped to device VMEM."""
    need = 2 * sum(_bytes(s, d) for s, d in block_specs) + scratch_bytes + (4 << 20)
    try:
        cap = int(getattr(pltpu.get_tpu_info(), "vmem_capacity_bytes", 64 << 20))
    except Exception:
        cap = 64 << 20
    if cap < (32 << 20):
        cap = 64 << 20
    return int(max(16 << 20, min(need, cap - (16 << 20))))


def _col_block(g):
    """Largest divisor of g that is a multiple of 128 and <= 2048 lanes."""
    for cand in (2048, 1024, 512, 256, 128):
        if g % cand == 0:
            return cand
    return g


# --------------------------------------------------------------------------- #
# Kernel 1: hoisted input projection  gx = x @ [W_ih_f | W_ih_b] + [b_f | b_b]
# Grid: (time-chunk rows) x (gate-column blocks).  Output stored bf16.
# --------------------------------------------------------------------------- #
def _proj_first_kernel(x_ref, w_ref, b_ref, gx_ref):
    gx_ref[...] = (
        jnp.dot(x_ref[...], w_ref[...], preferred_element_type=jnp.float32)
        + b_ref[...]).astype(gx_ref.dtype)


def _proj_next_kernel(yf_ref, yb_ref, wt_ref, wb_ref, b_ref, gx_ref):
    # Next-layer input is concat(y_f, y_b); avoid the concat by splitting W_ih rows.
    gx_ref[...] = (
        jnp.dot(yf_ref[...], wt_ref[...], preferred_element_type=jnp.float32)
        + jnp.dot(yb_ref[...], wb_ref[...], preferred_element_type=jnp.float32)
        + b_ref[...]).astype(gx_ref.dtype)


def input_projection_first(x2d, w, b, *, t_chunk, bp):
    rows, din = x2d.shape
    g8 = w.shape[1]
    tcb = t_chunk * bp
    n = rows // tcb
    colb = _col_block(g8)
    nc = g8 // colb
    vmem = _vmem_limit_bytes([((tcb, din), jnp.bfloat16),
                              ((din, colb), jnp.bfloat16),
                              ((1, colb), jnp.float32),
                              ((tcb, colb), jnp.bfloat16)])
    return pl.pallas_call(
        _proj_first_kernel,
        out_shape=jax.ShapeDtypeStruct((rows, g8), jnp.bfloat16),
        grid=(n, nc),
        in_specs=[pl.BlockSpec((tcb, din), lambda i, j: (i, 0)),
                  pl.BlockSpec((din, colb), lambda i, j: (0, j)),
                  pl.BlockSpec((1, colb), lambda i, j: (0, j))],
        out_specs=pl.BlockSpec((tcb, colb), lambda i, j: (i, j)),
        compiler_params=pltpu.CompilerParams(
            dimension_semantics=("parallel", "arbitrary"),
            vmem_limit_bytes=vmem),
    )(x2d, w, b)


def input_projection_next(y, w_top, w_bot, b, *, t_chunk, bp):
    # y: stacked (2, rows, hp) bf16 output of the previous bi-LSTM layer.
    _, rows, hp = y.shape
    g8 = w_top.shape[1]
    tcb = t_chunk * bp
    n = rows // tcb
    colb = _col_block(g8)
    nc = g8 // colb
    vmem = _vmem_limit_bytes([((tcb, hp), jnp.bfloat16),
                              ((tcb, hp), jnp.bfloat16),
                              ((hp, colb), jnp.bfloat16),
                              ((hp, colb), jnp.bfloat16),
                              ((1, colb), jnp.float32),
                              ((tcb, colb), jnp.bfloat16)])
    return pl.pallas_call(
        _proj_next_kernel,
        out_shape=jax.ShapeDtypeStruct((rows, g8), jnp.bfloat16),
        grid=(n, nc),
        in_specs=[pl.BlockSpec((None, tcb, hp), lambda i, j: (0, i, 0)),
                  pl.BlockSpec((None, tcb, hp), lambda i, j: (1, i, 0)),
                  pl.BlockSpec((hp, colb), lambda i, j: (0, j)),
                  pl.BlockSpec((hp, colb), lambda i, j: (0, j)),
                  pl.BlockSpec((1, colb), lambda i, j: (0, j))],
        out_specs=pl.BlockSpec((tcb, colb), lambda i, j: (i, j)),
        compiler_params=pltpu.CompilerParams(
            dimension_semantics=("parallel", "arbitrary"),
            vmem_limit_bytes=vmem),
    )(y, y, w_top, w_bot, b)


# --------------------------------------------------------------------------- #
# LSTM cell on a (Bp, 4Hp) pre-projected gate row.  Gate order i, f, g, o
# (PyTorch convention); only h @ W_hh remains inside the recurrence.
# --------------------------------------------------------------------------- #
def _lstm_cell(gx_row, h, c, wh_ref, hp):
    gates = gx_row.astype(jnp.float32) + jnp.dot(
        h.astype(jnp.bfloat16), wh_ref[...], preferred_element_type=jnp.float32)
    i_g = jax.nn.sigmoid(gates[:, 0 * hp:1 * hp])
    f_g = jax.nn.sigmoid(gates[:, 1 * hp:2 * hp])
    g_g = jnp.tanh(gates[:, 2 * hp:3 * hp])
    o_g = jax.nn.sigmoid(gates[:, 3 * hp:4 * hp])
    c_new = f_g * c + i_g * g_g
    h_new = o_g * jnp.tanh(c_new)
    return h_new, c_new


# --------------------------------------------------------------------------- #
# Kernel 2: bidirectional LSTM layer (intermediate layers).
# Grid = (direction, time-chunk).  direction is "parallel" (2 TCs on v7x);
# time chunks are "arbitrary" with h/c carried in VMEM scratch.  The backward
# direction walks the chunks (and rows inside a chunk) in reverse via index math.
# Chunks entirely past max(seq_len) are skipped (zeros written).
# --------------------------------------------------------------------------- #
def _bilstm_dir_kernel(maxlen_ref, lens_ref, gx_ref, wh_ref, y_ref,
                       h_sc, c_sc, *, t_chunk, bp, hp):
    d = pl.program_id(0)            # 0 = forward, 1 = backward
    i = pl.program_id(1)            # chunk step for this direction
    n = pl.num_programs(1)

    @pl.when(i == 0)
    def _():
        h_sc[...] = jnp.zeros_like(h_sc)
        c_sc[...] = jnp.zeros_like(c_sc)

    lens = lens_ref[...]                        # (Bp, 1) int32, hoisted
    max_len = maxlen_ref[0]
    chunk = i + d * (n - 1 - 2 * i)             # fwd: i ; bwd: n-1-i
    base = chunk * t_chunk                      # global time of chunk row 0

    @pl.when(base < max_len)
    def _run():
        def step(s, carry):
            h, c = carry
            r = s + d * (t_chunk - 1 - 2 * s)   # fwd: s ; bwd: t_chunk-1-s
            row = pl.multiple_of(r * bp, bp)
            h_new, c_new = _lstm_cell(gx_ref[pl.ds(row, bp), :], h, c, wh_ref, hp)
            valid = (base + r) < lens
            h = jnp.where(valid, h_new, h)
            c = jnp.where(valid, c_new, c)
            y_ref[pl.ds(row, bp), :] = jnp.where(valid, h_new, 0.0).astype(y_ref.dtype)
            return h, c

        h, c = jax.lax.fori_loop(0, t_chunk, step, (h_sc[...], c_sc[...]),
                                 unroll=min(8, t_chunk))
        h_sc[...] = h
        c_sc[...] = c

    @pl.when(base >= max_len)
    def _skip():
        # Entire chunk is padding: output zeros, state unchanged, no compute.
        y_ref[...] = jnp.zeros_like(y_ref)


def bilstm_layer(gx, lens2d, max_len, w_hh, *, t_chunk, bp, hp):
    rows = gx.shape[0]
    tcb = t_chunk * bp
    n = rows // tcb
    g4 = 4 * hp
    kernel = functools.partial(_bilstm_dir_kernel, t_chunk=t_chunk, bp=bp, hp=hp)
    vmem = _vmem_limit_bytes(
        [((bp, 1), jnp.int32),
         ((tcb, g4), jnp.bfloat16),
         ((hp, g4), jnp.bfloat16),
         ((tcb, hp), jnp.bfloat16)],
        scratch_bytes=2 * _bytes((bp, hp), jnp.float32))
    return pl.pallas_call(
        kernel,
        out_shape=jax.ShapeDtypeStruct((2, rows, hp), jnp.bfloat16),
        grid_spec=pltpu.PrefetchScalarGridSpec(
            num_scalar_prefetch=1,
            grid=(2, n),
            in_specs=[
                pl.BlockSpec((bp, 1), lambda d, i, ml: (0, 0)),                       # lens
                pl.BlockSpec((tcb, g4),
                             lambda d, i, ml, n=n: (i + d * (n - 1 - 2 * i), d)),     # gx half
                pl.BlockSpec((None, hp, g4), lambda d, i, ml: (d, 0, 0)),             # W_hh[d]
            ],
            out_specs=pl.BlockSpec(
                (None, tcb, hp),
                lambda d, i, ml, n=n: (d, i + d * (n - 1 - 2 * i), 0)),
            scratch_shapes=[pltpu.VMEM((bp, hp), jnp.float32)] * 2),
        compiler_params=pltpu.CompilerParams(
            dimension_semantics=("parallel", "arbitrary"),
            vmem_limit_bytes=vmem),
    )(max_len, lens2d, gx, w_hh)


# --------------------------------------------------------------------------- #
# Kernel 3: last bidirectional LSTM layer with fused epilogue
# (feature = y_f[len-1] + y_b[len-1], then fc1 + log_softmax).  No full-sequence
# output is materialized.  Both directions run per grid step (the epilogue needs
# both states), each guarded so fully-padded chunks skip their compute.
# --------------------------------------------------------------------------- #
def _bilstm_last_kernel(maxlen_ref, lens_ref, gxf_ref, gxb_ref, whf_ref, whb_ref,
                        fcw_ref, fcb_ref, out_ref,
                        hf_sc, cf_sc, hb_sc, cb_sc, hbl_sc,
                        *, t_chunk, bp, hp, nout):
    i = pl.program_id(0)
    n = pl.num_programs(0)

    @pl.when(i == 0)
    def _():
        hf_sc[...] = jnp.zeros_like(hf_sc)
        cf_sc[...] = jnp.zeros_like(cf_sc)
        hb_sc[...] = jnp.zeros_like(hb_sc)
        cb_sc[...] = jnp.zeros_like(cb_sc)
        hbl_sc[...] = jnp.zeros_like(hbl_sc)

    lens = lens_ref[...]
    max_len = maxlen_ref[0]
    base_f = i * t_chunk
    base_b = (n - 1 - i) * t_chunk
    unroll = min(8, t_chunk)

    @pl.when(base_f < max_len)
    def _fwd():
        def step(s, carry):
            hf, cf = carry
            rf = pl.multiple_of(s * bp, bp)
            hf_new, cf_new = _lstm_cell(gxf_ref[pl.ds(rf, bp), :], hf, cf, whf_ref, hp)
            vf = (base_f + s) < lens
            return jnp.where(vf, hf_new, hf), jnp.where(vf, cf_new, cf)

        hf, cf = jax.lax.fori_loop(0, t_chunk, step, (hf_sc[...], cf_sc[...]),
                                   unroll=unroll)
        hf_sc[...] = hf
        cf_sc[...] = cf

    @pl.when(base_b < max_len)
    def _bwd():
        def step(s, carry):
            hb, cb, hbl = carry
            sb = t_chunk - 1 - s
            rb = pl.multiple_of(sb * bp, bp)
            hb_new, cb_new = _lstm_cell(gxb_ref[pl.ds(rb, bp), :], hb, cb, whb_ref, hp)
            t_b = base_b + sb
            vb = t_b < lens
            hb = jnp.where(vb, hb_new, hb)
            cb = jnp.where(vb, cb_new, cb)
            hbl = jnp.where(t_b == lens - 1, hb_new, hbl)   # y_b at t = len-1
            return hb, cb, hbl

        hb, cb, hbl = jax.lax.fori_loop(
            0, t_chunk, step, (hb_sc[...], cb_sc[...], hbl_sc[...]), unroll=unroll)
        hb_sc[...] = hb
        cb_sc[...] = cb
        hbl_sc[...] = hbl

    # Fused epilogue on the final grid step: feature gather + fc1 + log_softmax.
    @pl.when(i == n - 1)
    def _epi():
        # fwd state is frozen past t = len-1, so hf_sc == y_f[len-1].
        feat = hf_sc[...] + hbl_sc[...]                               # (Bp, Hp)
        logits = (jnp.dot(feat.astype(jnp.bfloat16), fcw_ref[...],
                          preferred_element_type=jnp.float32) + fcb_ref[...])
        col = jax.lax.broadcasted_iota(jnp.int32, logits.shape, 1)
        logits = jnp.where(col < nout, logits, -1e30)                 # mask pad lanes
        m = jnp.max(logits, axis=-1, keepdims=True)
        sh = logits - m
        lse = jnp.log(jnp.sum(jnp.exp(sh), axis=-1, keepdims=True))
        out_ref[...] = sh - lse


def bilstm_last_layer(gx, lens2d, max_len, w_hh, fc_w, fc_b, *,
                      t_chunk, bp, hp, nout):
    rows = gx.shape[0]
    tcb = t_chunk * bp
    n = rows // tcb
    g4 = 4 * hp
    noutp = fc_w.shape[1]
    kernel = functools.partial(_bilstm_last_kernel, t_chunk=t_chunk, bp=bp,
                               hp=hp, nout=nout)
    vmem = _vmem_limit_bytes(
        [((bp, 1), jnp.int32),
         ((tcb, g4), jnp.bfloat16), ((tcb, g4), jnp.bfloat16),
         ((hp, g4), jnp.bfloat16), ((hp, g4), jnp.bfloat16),
         ((hp, noutp), jnp.bfloat16), ((1, noutp), jnp.float32),
         ((bp, noutp), jnp.float32)],
        scratch_bytes=5 * _bytes((bp, hp), jnp.float32))
    return pl.pallas_call(
        kernel,
        out_shape=jax.ShapeDtypeStruct((bp, noutp), jnp.float32),
        grid_spec=pltpu.PrefetchScalarGridSpec(
            num_scalar_prefetch=1,
            grid=(n,),
            in_specs=[
                pl.BlockSpec((bp, 1), lambda i, ml: (0, 0)),
                pl.BlockSpec((tcb, g4), lambda i, ml: (i, 0)),
                pl.BlockSpec((tcb, g4), lambda i, ml, n=n: (n - 1 - i, 1)),
                pl.BlockSpec((None, hp, g4), lambda i, ml: (0, 0, 0)),
                pl.BlockSpec((None, hp, g4), lambda i, ml: (1, 0, 0)),
                pl.BlockSpec((hp, noutp), lambda i, ml: (0, 0)),
                pl.BlockSpec((1, noutp), lambda i, ml: (0, 0)),
            ],
            out_specs=pl.BlockSpec((bp, noutp), lambda i, ml: (0, 0)),
            scratch_shapes=[pltpu.VMEM((bp, hp), jnp.float32)] * 5),
        compiler_params=pltpu.CompilerParams(
            dimension_semantics=("arbitrary",),
            vmem_limit_bytes=vmem),
    )(max_len, lens2d, gx, gx, w_hh, w_hh, fc_w, fc_b)


# --------------------------------------------------------------------------- #
# Parameter init (deterministic; matches the shapes nn.LSTM / nn.Linear create).
# Gate blocks are each zero-padded to Hp lanes so padded lanes stay exactly 0.
# --------------------------------------------------------------------------- #
def init_params(key, ninp, nhid, nout, nlayers):
    hp = _round_up(nhid, 128)
    noutp = _round_up(nout, 128)
    k = 1.0 / float(nhid) ** 0.5

    def unif(kk, shape):
        return jax.random.uniform(kk, shape, jnp.float32, -k, k)

    def pad_gate_cols(w):  # (din, 4*nhid) -> (din, 4*hp), per-gate zero padding
        din = w.shape[0]
        out = jnp.zeros((din, 4, hp), jnp.float32)
        out = out.at[:, :, :nhid].set(w.reshape(din, 4, nhid))
        return out.reshape(din, 4 * hp)

    layers = []
    for l in range(nlayers):
        din = ninp if l == 0 else 2 * nhid
        wh_list, cat_ih, cat_b = [], [], []
        for _d in range(2):   # 0 = forward, 1 = backward
            key, k1, k2, k3, k4 = jax.random.split(key, 5)
            w_ih = unif(k1, (din, 4 * nhid))
            w_hh = unif(k2, (nhid, 4 * nhid))
            bias = unif(k3, (1, 4 * nhid)) + unif(k4, (1, 4 * nhid))  # b_ih + b_hh
            w_hh_p = jnp.zeros((hp, 4 * hp), jnp.float32).at[:nhid].set(
                pad_gate_cols(w_hh))
            wh_list.append(w_hh_p)
            cat_ih.append(pad_gate_cols(w_ih))
            cat_b.append(pad_gate_cols(bias))
        layer = {"w_hh": jnp.stack(wh_list, axis=0).astype(jnp.bfloat16),  # (2,Hp,4Hp)
                 "b": jnp.concatenate(cat_b, axis=1)}                      # (1, 8Hp) f32
        w_ih_cat = jnp.concatenate(cat_ih, axis=1)                         # (din, 8Hp)
        if l == 0:
            layer["w_ih"] = w_ih_cat.astype(jnp.bfloat16)
        else:
            # split input rows: forward-hidden rows / backward-hidden rows
            top = jnp.zeros((hp, 8 * hp), jnp.float32).at[:nhid].set(w_ih_cat[:nhid])
            bot = jnp.zeros((hp, 8 * hp), jnp.float32).at[:nhid].set(w_ih_cat[nhid:])
            layer["w_ih_top"] = top.astype(jnp.bfloat16)
            layer["w_ih_bot"] = bot.astype(jnp.bfloat16)
        layers.append(layer)

    key, kf1, kf2 = jax.random.split(key, 3)
    fc_w = jnp.zeros((hp, noutp), jnp.float32).at[:nhid, :nout].set(
        unif(kf1, (nhid, nout)))
    fc_b = jnp.zeros((1, noutp), jnp.float32).at[:, :nout].set(unif(kf2, (1, nout)))
    return {"layers": layers,
            "fc_w": fc_w.astype(jnp.bfloat16), "fc_b": fc_b,
            "hp": hp, "noutp": noutp, "nhid": nhid, "nout": nout}


# --------------------------------------------------------------------------- #
# Forward pass (glue around the Pallas kernels)
# --------------------------------------------------------------------------- #
def rnn_forward(params, x, seq_len, *, t_chunk=64):
    # x: (B, T, ninp) batch-first (like the PyTorch module), seq_len: (B,) int32.
    B, T, ninp = x.shape
    hp = params["hp"]
    nout = params["nout"]
    bp = _round_up(B, 8)
    tc = min(t_chunk, T)
    tp = _round_up(T, tc)

    # time-major, zero-pad batch -> Bp and time -> Tp, flatten to a 2-D slab
    x_tm = jnp.transpose(x, (1, 0, 2)).astype(jnp.float32)      # (T, B, ninp)
    x_tm = jnp.pad(x_tm, ((0, tp - T), (0, bp - B), (0, 0)))
    x2d = x_tm.reshape(tp * bp, ninp).astype(jnp.bfloat16)
    lens2d = jnp.pad(seq_len.astype(jnp.int32), (0, bp - B)).reshape(bp, 1)
    max_len = jnp.max(seq_len).astype(jnp.int32).reshape(1)

    nl = len(params["layers"])
    y = None
    logp = None
    for l, layer in enumerate(params["layers"]):
        if l == 0:
            gx = input_projection_first(x2d, layer["w_ih"], layer["b"],
                                        t_chunk=tc, bp=bp)
        else:
            gx = input_projection_next(y, layer["w_ih_top"], layer["w_ih_bot"],
                                       layer["b"], t_chunk=tc, bp=bp)
        if l < nl - 1:
            y = bilstm_layer(gx, lens2d, max_len, layer["w_hh"],
                             t_chunk=tc, bp=bp, hp=hp)
        else:
            logp = bilstm_last_layer(gx, lens2d, max_len, layer["w_hh"],
                                     params["fc_w"], params["fc_b"],
                                     t_chunk=tc, bp=bp, hp=hp, nout=nout)
    return logp[:B, :nout]


# --------------------------------------------------------------------------- #
if __name__ == "__main__":
    # Small config consistent with RNN('LSTM', ninp, nhid, nout, nlayers, dropout)
    ninp, nhid, nout, nlayers = 16, 32, 8, 2
    B, T = 2, 8

    key = jax.random.PRNGKey(0)
    key, kx = jax.random.split(key)
    params = init_params(key, ninp, nhid, nout, nlayers)

    x = jax.random.normal(kx, (B, T, ninp), jnp.float32)
    seq_len = jnp.array([8, 5], dtype=jnp.int32)   # descending, as pack_padded requires

    out = jax.block_until_ready(rnn_forward(params, x, seq_len))

    # sanity: log_softmax rows must exponentiate-sum to 1
    row_sums = jnp.exp(out).sum(axis=-1)
    assert out.shape == (B, nout)
    assert bool(jnp.all(jnp.isfinite(out)))
    assert bool(jnp.allclose(row_sums, 1.0, atol=1e-4))

    print("KERNEL_OK")
</pallas_src>

<mosaic_0001>
module attributes {stable_mosaic.version = 11 : i64} {
  func.func @_proj_first_kernel(%arg0: i32, %arg1: i32, %arg2: memref<64x16xbf16, #tpu.memory_space<vmem>>, %arg3: memref<16x1024xbf16, #tpu.memory_space<vmem>>, %arg4: memref<1x1024xf32, #tpu.memory_space<vmem>>, %arg5: memref<64x1024xbf16, #tpu.memory_space<vmem>>) attributes {dimension_semantics = [#tpu.dimension_semantics<parallel>, #tpu.dimension_semantics<arbitrary>], iteration_bounds = array<i64: 1, 1>, scalar_prefetch = 0 : i64, scratch_operands = 0 : i64, tpu.core_type = #tpu.core_type<tc>, window_params = [{transform_indices = @transform_0, window_bounds = array<i64: 64, 16>}, {transform_indices = @transform_1, window_bounds = array<i64: 16, 1024>}, {transform_indices = @transform_2, window_bounds = array<i64: 1, 1024>}, {transform_indices = @transform_3, window_bounds = array<i64: 64, 1024>}]} {
    %c0 = arith.constant 0 : index
    %c0_0 = arith.constant 0 : index
    %0 = vector.load %arg2[%c0, %c0_0] : memref<64x16xbf16, #tpu.memory_space<vmem>>, vector<64x16xbf16>
    %c0_1 = arith.constant 0 : index
    %c0_2 = arith.constant 0 : index
    %1 = vector.load %arg3[%c0_1, %c0_2] : memref<16x1024xbf16, #tpu.memory_space<vmem>>, vector<16x1024xbf16>
    %cst = arith.constant dense<0.000000e+00> : vector<64x1024xf32>
    %2 = tpu.matmul %0, %1, %cst {dimension_numbers = #tpu.dot_dimension_numbers<[1], [0], [0], [1], [0, 0, 1, 1], [], []>} : vector<64x16xbf16>, vector<16x1024xbf16>, vector<64x1024xf32> -> vector<64x1024xf32>
    %c0_3 = arith.constant 0 : index
    %c0_4 = arith.constant 0 : index
    %3 = vector.load %arg4[%c0_3, %c0_4] : memref<1x1024xf32, #tpu.memory_space<vmem>>, vector<1x1024xf32>
    %4 = vector.broadcast %3 : vector<1x1024xf32> to vector<64x1024xf32>
    %5 = arith.addf %2, %4 : vector<64x1024xf32>
    %6 = arith.truncf %5 : vector<64x1024xf32> to vector<64x1024xbf16>
    %c0_5 = arith.constant 0 : index
    %c0_6 = arith.constant 0 : index
    %7 = vector.load %arg5[%c0_5, %c0_6] : memref<64x1024xbf16, #tpu.memory_space<vmem>>, vector<64x1024xbf16>
    tpu.vector_store %arg5[%c0_5, %c0_6], %6 {strides = array<i32>} : memref<64x1024xbf16, #tpu.memory_space<vmem>>, vector<64x1024xbf16>,
    return
  }
  func.func @transform_0(%arg0: i32, %arg1: i32) -> (i32, i32) {
    %c0_i32 = arith.constant 0 : i32
    %c0_i32_0 = arith.constant 0 : i32
    return %arg0, %c0_i32 : i32, i32
  }
  func.func @transform_1(%arg0: i32, %arg1: i32) -> (i32, i32) {
    %c0_i32 = arith.constant 0 : i32
    %c0_i32_0 = arith.constant 0 : i32
    return %c0_i32, %arg1 : i32, i32
  }
  func.func @transform_2(%arg0: i32, %arg1: i32) -> (i32, i32) {
    %c0_i32 = arith.constant 0 : i32
    %c0_i32_0 = arith.constant 0 : i32
    return %c0_i32, %arg1 : i32, i32
  }
  func.func @transform_3(%arg0: i32, %arg1: i32) -> (i32, i32) {
    %c0_i32 = arith.constant 0 : i32
    return %arg0, %arg1 : i32, i32
  }
}

</mosaic_0001>

<llo_original>
// kernel: tpu_custom_call.1
$region0: #{tpu_custom_call.1}
  #allocation0 [shape = 'u32[]', space=smem, size = 0x4, offset = 0x4, fixed_abs, tag = 'smem constant byte address 0x4 - core index']
  #allocation1 [shape = 'u32[72,128]{1,0:T(1,128)}', space=vmem, size = 0x9000, scoped, tag = 'internal scratch']
  %s0 = inlined_call_operand.vmem [shape: bf16[64,16], index: 0, kind: input, shape index: {}]
  %s1 = inlined_call_operand.hbm [shape: bf16[16,1024], index: 1, kind: input, shape index: {}]
  %s2 = inlined_call_operand.vmem [shape: f32[1,1024], index: 2, kind: input, shape index: {}]
  %s3 = inlined_call_operand.hbm [shape: bf16[64,1024], index: 3, kind: output, shape index: {}]
  %s4 = sld [smem:[#allocation0]]
  $region26: #{tpu_custom_call.1} parent=0
    _
  %s6 = ssub.s32 1, %s4
  %s7 = scalar_select 0, %s6, %s4
  $region1: #{tpu_custom_call.1} parent=0
    #allocation2 [shape = 'u8[32768]{0}', space=vmem, size = 0x8000, scoped, tag = 'input window, operand 1, single buffered']
    #allocation3 [shape = 's32[1]{0}', space=sflag, size = 0x4, scoped, tag = 'scoped memory for tpu_custom_call.1']
    #allocation4 [shape = 's32[1]{0}', space=sflag, size = 0x4, scoped, tag = 'scoped memory for tpu_custom_call.1']
    #allocation5 [shape = 'u8[131072]{0}', space=vmem, size = 0x20000, scoped, tag = 'output window, operand 0, single buffered']
    %8 = vsyncpa [#allocation3], 0
    %9 = vsyncpa [#allocation4], 0
    // Predicated region
    $region2: #{tpu_custom_call.1} parent=1 // pred_check
      _
    $region3: #{tpu_custom_call.1} parent=1 // pred_check_branch
      %11 = sbr.rel (0) target = $region5
    $region4: #{tpu_custom_call.1} parent=1 // pred_region
      _
    $region5: #{tpu_custom_call.1} parent=1 // pred_fallthru
      _
    // Predicated region
    $region6: #{tpu_custom_call.1} parent=1 // pred_check
      _
    $region7: #{tpu_custom_call.1} parent=1 // pred_check_branch
      %13 = sbr.rel (0) target = $region9
    $region8: #{tpu_custom_call.1} parent=1 // pred_region
      %15 = vsyncadd [#allocation3], 0
      %s16 = sshll.u32 %s1, 4
      %s17 = int_to_ptr.hbm [resolvable:$true] %s16
      %s18 = sshll.u32 [#allocation2], 4
      %s19 = int_to_ptr.vmem [resolvable:$true] %s18
      %24 = dma.hbm_to_vmem [thread:$0]  %s17, 1024, %s19, [#allocation3], 512, 512, 32
    $region9: #{tpu_custom_call.1} parent=1 // pred_fallthru
      _
    // Predicated region
    $region10: #{tpu_custom_call.1} parent=1 // pred_check
      _
    $region11: #{tpu_custom_call.1} parent=1 // pred_check_branch
      %26 = sbr.rel (0) target = $region13
    $region12: #{tpu_custom_call.1} parent=1 // pred_region
      _
    $region13: #{tpu_custom_call.1} parent=1 // pred_fallthru
      _
    // Predicated region
    $region14: #{tpu_custom_call.1} parent=1 // pred_check
      _
    $region15: #{tpu_custom_call.1} parent=1 // pred_check_branch
      %28 = sbr.rel (0) target = $region17
    $region16: #{tpu_custom_call.1} parent=1 // pred_region
      %30 = dma.done [#allocation3], 1024
    $region17: #{tpu_custom_call.1} parent=1 // pred_fallthru
      _
    %v32 = vld [vmem:[%s0] sm:$0xf]
    %v33 = vld [vmem:[%s0 + $0x4] sm:$0xf]
    %v34 = vld [vmem:[%s0 + $0x8] sm:$0xf]
    %v35 = vld [vmem:[%s0 + $0xc] sm:$0xf]
    %v36 = vld [vmem:[%s0 + $0x10] sm:$0xf]
    %v37 = vld [vmem:[%s0 + $0x14] sm:$0xf]
    %v38 = vld [vmem:[%s0 + $0x18] sm:$0xf]
    %v39 = vld [vmem:[%s0 + $0x1c] sm:$0xf]
    %v40 = vld [vmem:[#allocation2] sm:$0xff]
    %v41 = vld [vmem:[#allocation2 + $0x8] sm:$0xff]
    %v42 = vld [vmem:[#allocation2 + $0x10] sm:$0xff]
    %v43 = vld [vmem:[#allocation2 + $0x18] sm:$0xff]
    %v44 = vld [vmem:[#allocation2 + $0x20] sm:$0xff]
    %v45 = vld [vmem:[#allocation2 + $0x28] sm:$0xff]
    %v46 = vld [vmem:[#allocation2 + $0x30] sm:$0xff]
    %v47 = vld [vmem:[#allocation2 + $0x38] sm:$0xff]
    %v48 = vld [vmem:[%s2] sm:$0xff]
    %v50 = vperm.slane %v48, 0
    %v51 = vperm.slane %v48, 1
    %v52 = vperm.slane %v48, 2
    %v53 = vperm.slane %v48, 3
    %v54 = vperm.slane %v48, 4
    %v55 = vperm.slane %v48, 5
    %v56 = vperm.slane %v48, 6
    %v57 = vperm.slane %v48, 7
    %v74 = vunpack.c.l.b16 %v32
    %v75 = vunpack.c.l.b16 %v33
    %v76 = vunpack.c.l.b16 %v34
    %v77 = vunpack.c.l.b16 %v35
    %v78 = vunpack.c.l.b16 %v36
    %v79 = vunpack.c.l.b16 %v37
    %v80 = vunpack.c.l.b16 %v38
    %v81 = vunpack.c.l.b16 %v39
    %v82 = vpack.c.b16 %v75, %v74
    %v83 = vpack.c.b16 %v77, %v76
    %v84 = vpack.c.b16 %v79, %v78
    %v85 = vpack.c.b16 %v81, %v80
    %v94 = vunpack.c.l.b16 %v40
    %v95 = vunpack.c.h.b16 %v40
    %v96 = vunpack.c.l.b16 %v41
    %v97 = vunpack.c.h.b16 %v41
    %v98 = vunpack.c.l.b16 %v42
    %v99 = vunpack.c.h.b16 %v42
    %v100 = vunpack.c.l.b16 %v43
    %v101 = vunpack.c.h.b16 %v43
    %v102 = vunpack.c.l.b16 %v44
    %v103 = vunpack.c.h.b16 %v44
    %v104 = vunpack.c.l.b16 %v45
    %v105 = vunpack.c.h.b16 %v45
    %v106 = vunpack.c.l.b16 %v46
    %v107 = vunpack.c.h.b16 %v46
    %v108 = vunpack.c.l.b16 %v47
    %v109 = vunpack.c.h.b16 %v47
    %v110 = vpack.c.b16 %v102, %v94
    %v111 = vpack.c.b16 %v103, %v95
    %v112 = vpack.c.b16 %v104, %v96
    %v113 = vpack.c.b16 %v105, %v97
    %v114 = vpack.c.b16 %v106, %v98
    %v115 = vpack.c.b16 %v107, %v99
    %v116 = vpack.c.b16 %v108, %v100
    %v117 = vpack.c.b16 %v109, %v101
    %vm126 = vcmask 130048
    %v128 = vsel %vm126, %v82, 0
    %v131 = vsel %vm126, %v83, 0
    %v134 = vsel %vm126, %v84, 0
    %v137 = vsel %vm126, %v85, 0
    %139 = vmatpush.bf16.msra.mxu0 0
    %140 = vmatpush.bf16.msra.mxu0 0
    %141 = vmatpush.bf16.msra.mxu0 0
    %142 = vmatpush.bf16.msra.mxu0 0
    %143 = vmatpush.bf16.msra.mxu0 0
    %144 = vmatpush.bf16.msra.mxu0 0
    %145 = vmatpush.bf16.msra.mxu0 0
    %146 = vmatpush.bf16.msra.mxu0 %v110
    %147 = vmatmul.bf16.gmra.mxu0 %v128
    %v148 = vpop.f32.mrf.mxu0
    %v149 = vadd.f32 %v50, %v148
    %v150 = vpop.f32.mrf.mxu0
    %v151 = vadd.f32 %v50, %v150
    %152 = vmatmul.bf16.gmra.mxu0 %v131
    %v153 = vpop.f32.mrf.mxu0
    %v154 = vadd.f32 %v50, %v153
    %v155 = vpop.f32.mrf.mxu0
    %v156 = vadd.f32 %v50, %v155
    %157 = vmatmul.bf16.gmra.mxu0 %v134
    %v158 = vpop.f32.mrf.mxu0
    %v159 = vadd.f32 %v50, %v158
    %v160 = vpop.f32.mrf.mxu0
    %v161 = vadd.f32 %v50, %v160
    %162 = vmatmul.bf16.gmra.mxu0 %v137
    %v163 = vpop.f32.mrf.mxu0
    %v164 = vadd.f32 %v50, %v163
    %v165 = vpop.f32.mrf.mxu0
    %v166 = vadd.f32 %v50, %v165
    %167 = vdwg.mxu0
    %168 = vmatpush.bf16.msra.mxu0 0
    %169 = vmatpush.bf16.msra.mxu0 0
    %170 = vmatpush.bf16.msra.mxu0 0
    %171 = vmatpush.bf16.msra.mxu0 0
    %172 = vmatpush.bf16.msra.mxu0 0
    %173 = vmatpush.bf16.msra.mxu0 0
    %174 = vmatpush.bf16.msra.mxu0 0
    %175 = vmatpush.bf16.msra.mxu0 %v111
    %176 = vmatmul.bf16.gmra.mxu0 %v128
    %v177 = vpop.f32.mrf.mxu0
    %v178 = vadd.f32 %v51, %v177
    %v179 = vpop.f32.mrf.mxu0
    %v180 = vadd.f32 %v51, %v179
    %181 = vmatmul.bf16.gmra.mxu0 %v131
    %v182 = vpop.f32.mrf.mxu0
    %v183 = vadd.f32 %v51, %v182
    %v184 = vpop.f32.mrf.mxu0
    %v185 = vadd.f32 %v51, %v184
    %186 = vmatmul.bf16.gmra.mxu0 %v134
    %v187 = vpop.f32.mrf.mxu0
    %v188 = vadd.f32 %v51, %v187
    %v189 = vpop.f32.mrf.mxu0
    %v190 = vadd.f32 %v51, %v189
    %191 = vmatmul.bf16.gmra.mxu0 %v137
    %v192 = vpop.f32.mrf.mxu0
    %v193 = vadd.f32 %v51, %v192
    %v194 = vpop.f32.mrf.mxu0
    %v195 = vadd.f32 %v51, %v194
    %196 = vdwg.mxu0
    %197 = vmatpush.bf16.msra.mxu0 0
    %198 = vmatpush.bf16.msra.mxu0 0
    %199 = vmatpush.bf16.msra.mxu0 0
    %200 = vmatpush.bf16.msra.mxu0 0
    %201 = vmatpush.bf16.msra.mxu0 0
    %202 = vmatpush.bf16.msra.mxu0 0
    %203 = vmatpush.bf16.msra.mxu0 0
    %204 = vmatpush.bf16.msra.mxu0 %v112
    %205 = vmatmul.bf16.gmra.mxu0 %v128
    %v206 = vpop.f32.mrf.mxu0
    %v207 = vadd.f32 %v52, %v206
    %v208 = vpop.f32.mrf.mxu0
    %v209 = vadd.f32 %v52, %v208
    %210 = vmatmul.bf16.gmra.mxu0 %v131
    %v211 = vpop.f32.mrf.mxu0
    %v212 = vadd.f32 %v52, %v211
    %v213 = vpop.f32.mrf.mxu0
    %v214 = vadd.f32 %v52, %v213
    %215 = vmatmul.bf16.gmra.mxu0 %v134
    %v216 = vpop.f32.mrf.mxu0
    %v217 = vadd.f32 %v52, %v216
    %v218 = vpop.f32.mrf.mxu0
    %v219 = vadd.f32 %v52, %v218
    %220 = vmatmul.bf16.gmra.mxu0 %v137
    %v221 = vpop.f32.mrf.mxu0
    %v222 = vadd.f32 %v52, %v221
    %v223 = vpop.f32.mrf.mxu0
    %v224 = vadd.f32 %v52, %v223
    %225 = vdwg.mxu0
    %226 = vmatpush.bf16.msra.mxu0 0
    %227 = vmatpush.bf16.msra.mxu0 0
    %228 = vmatpush.bf16.msra.mxu0 0
    %229 = vmatpush.bf16.msra.mxu0 0
    %230 = vmatpush.bf16.msra.mxu0 0
    %231 = vmatpush.bf16.msra.mxu0 0
    %232 = vmatpush.bf16.msra.mxu0 0
    %233 = vmatpush.bf16.msra.mxu0 %v113
    %234 = vmatmul.bf16.gmra.mxu0 %v128
    %v235 = vpop.f32.mrf.mxu0
    %v236 = vadd.f32 %v53, %v235
    %v237 = vpop.f32.mrf.mxu0
    %v238 = vadd.f32 %v53, %v237
    %239 = vmatmul.bf16.gmra.mxu0 %v131
    %v240 = vpop.f32.mrf.mxu0
    %v241 = vadd.f32 %v53, %v240
    %v242 = vpop.f32.mrf.mxu0
    %v243 = vadd.f32 %v53, %v242
    %244 = vmatmul.bf16.gmra.mxu0 %v134
    %v245 = vpop.f32.mrf.mxu0
    %v246 = vadd.f32 %v53, %v245
    %v247 = vpop.f32.mrf.mxu0
    %v248 = vadd.f32 %v53, %v247
    %249 = vmatmul.bf16.gmra.mxu0 %v137
    %v250 = vpop.f32.mrf.mxu0
    %v251 = vadd.f32 %v53, %v250
    %v252 = vpop.f32.mrf.mxu0
    %v253 = vadd.f32 %v53, %v252
    %254 = vdwg.mxu0
    %255 = vmatpush.bf16.msra.mxu0 0
    %256 = vmatpush.bf16.msra.mxu0 0
    %257 = vmatpush.bf16.msra.mxu0 0
    %258 = vmatpush.bf16.msra.mxu0 0
    %259 = vmatpush.bf16.msra.mxu0 0
    %260 = vmatpush.bf16.msra.mxu0 0
    %261 = vmatpush.bf16.msra.mxu0 0
    %262 = vmatpush.bf16.msra.mxu0 %v114
    %263 = vmatmul.bf16.gmra.mxu0 %v128
    %v264 = vpop.f32.mrf.mxu0
    %v265 = vadd.f32 %v54, %v264
    %v266 = vpop.f32.mrf.mxu0
    %v267 = vadd.f32 %v54, %v266
    %268 = vmatmul.bf16.gmra.mxu0 %v131
    %v269 = vpop.f32.mrf.mxu0
    %v270 = vadd.f32 %v54, %v269
    %v271 = vpop.f32.mrf.mxu0
    %v272 = vadd.f32 %v54, %v271
    %273 = vmatmul.bf16.gmra.mxu0 %v134
    %v274 = vpop.f32.mrf.mxu0
    %v275 = vadd.f32 %v54, %v274
    %v276 = vpop.f32.mrf.mxu0
    %v277 = vadd.f32 %v54, %v276
    %278 = vmatmul.bf16.gmra.mxu0 %v137
    %v279 = vpop.f32.mrf.mxu0
    %v280 = vadd.f32 %v54, %v279
    %v281 = vpop.f32.mrf.mxu0
    %v282 = vadd.f32 %v54, %v281
    %283 = vdwg.mxu0
    %284 = vmatpush.bf16.msra.mxu0 0
    %285 = vmatpush.bf16.msra.mxu0 0
    %286 = vmatpush.bf16.msra.mxu0 0
    %287 = vmatpush.bf16.msra.mxu0 0
    %288 = vmatpush.bf16.msra.mxu0 0
    %289 = vmatpush.bf16.msra.mxu0 0
    %290 = vmatpush.bf16.msra.mxu0 0
    %291 = vmatpush.bf16.msra.mxu0 %v115
    %292 = vmatmul.bf16.gmra.mxu0 %v128
    %v293 = vpop.f32.mrf.mxu0
    %v294 = vadd.f32 %v55, %v293
    %v295 = vpop.f32.mrf.mxu0
    %v296 = vadd.f32 %v55, %v295
    %297 = vmatmul.bf16.gmra.mxu0 %v131
    %v298 = vpop.f32.mrf.mxu0
    %v299 = vadd.f32 %v55, %v298
    %v300 = vpop.f32.mrf.mxu0
    %v301 = vadd.f32 %v55, %v300
    %302 = vmatmul.bf16.gmra.mxu0 %v134
    %v303 = vpop.f32.mrf.mxu0
    %v304 = vadd.f32 %v55, %v303
    %v305 = vpop.f32.mrf.mxu0
    %v306 = vadd.f32 %v55, %v305
    %307 = vmatmul.bf16.gmra.mxu0 %v137
    %v308 = vpop.f32.mrf.mxu0
    %v309 = vadd.f32 %v55, %v308
    %v310 = vpop.f32.mrf.mxu0
    %v311 = vadd.f32 %v55, %v310
    %312 = vdwg.mxu0
    %313 = vmatpush.bf16.msra.mxu0 0
    %314 = vmatpush.bf16.msra.mxu0 0
    %315 = vmatpush.bf16.msra.mxu0 0
    %316 = vmatpush.bf16.msra.mxu0 0
    %317 = vmatpush.bf16.msra.mxu0 0
    %318 = vmatpush.bf16.msra.mxu0 0
    %319 = vmatpush.bf16.msra.mxu0 0
    %320 = vmatpush.bf16.msra.mxu0 %v116
    %321 = vmatmul.bf16.gmra.mxu0 %v128
    %v322 = vpop.f32.mrf.mxu0
    %v323 = vadd.f32 %v56, %v322
    %v324 = vpop.f32.mrf.mxu0
    %v325 = vadd.f32 %v56, %v324
    %326 = vmatmul.bf16.gmra.mxu0 %v131
    %v327 = vpop.f32.mrf.mxu0
    %v328 = vadd.f32 %v56, %v327
    %v329 = vpop.f32.mrf.mxu0
    %v330 = vadd.f32 %v56, %v329
    %331 = vmatmul.bf16.gmra.mxu0 %v134
    %v332 = vpop.f32.mrf.mxu0
    %v333 = vadd.f32 %v56, %v332
    %v334 = vpop.f32.mrf.mxu0
    %v335 = vadd.f32 %v56, %v334
    %336 = vmatmul.bf16.gmra.mxu0 %v137
    %v337 = vpop.f32.mrf.mxu0
    %v338 = vadd.f32 %v56, %v337
    %v339 = vpop.f32.mrf.mxu0
    %v340 = vadd.f32 %v56, %v339
    %341 = vdwg.mxu0
    %342 = vmatpush.bf16.msra.mxu0 0
    %343 = vmatpush.bf16.msra.mxu0 0
    %344 = vmatpush.bf16.msra.mxu0 0
    %345 = vmatpush.bf16.msra.mxu0 0
    %346 = vmatpush.bf16.msra.mxu0 0
    %347 = vmatpush.bf16.msra.mxu0 0
    %348 = vmatpush.bf16.msra.mxu0 0
    %349 = vmatpush.bf16.msra.mxu0 %v117
    %350 = vmatmul.bf16.gmra.mxu0 %v128
    %v351 = vpop.f32.mrf.mxu0
    %v352 = vadd.f32 %v57, %v351
    %v353 = vpop.f32.mrf.mxu0
    %v354 = vadd.f32 %v57, %v353
    %355 = vmatmul.bf16.gmra.mxu0 %v131
    %v356 = vpop.f32.mrf.mxu0
    %v357 = vadd.f32 %v57, %v356
    %v358 = vpop.f32.mrf.mxu0
    %v359 = vadd.f32 %v57, %v358
    %360 = vmatmul.bf16.gmra.mxu0 %v134
    %v361 = vpop.f32.mrf.mxu0
    %v362 = vadd.f32 %v57, %v361
    %v363 = vpop.f32.mrf.mxu0
    %v364 = vadd.f32 %v57, %v363
    %365 = vmatmul.bf16.gmra.mxu0 %v137
    %v366 = vpop.f32.mrf.mxu0
    %v367 = vadd.f32 %v57, %v366
    %v368 = vpop.f32.mrf.mxu0
    %v369 = vadd.f32 %v57, %v368
    %370 = vdwg.mxu0
    %v371 = vpack.c.bf16 %v178, %v149
    %v372 = vpack.c.bf16 %v236, %v207
    %v373 = vpack.c.bf16 %v294, %v265
    %v374 = vpack.c.bf16 %v352, %v323
    %v375 = vpack.c.bf16 %v180, %v151
    %v376 = vpack.c.bf16 %v238, %v209
    %v377 = vpack.c.bf16 %v296, %v267
    %v378 = vpack.c.bf16 %v354, %v325
    %v379 = vpack.c.bf16 %v183, %v154
    %v380 = vpack.c.bf16 %v241, %v212
    %v381 = vpack.c.bf16 %v299, %v270
    %v382 = vpack.c.bf16 %v357, %v328
    %v383 = vpack.c.bf16 %v185, %v156
    %v384 = vpack.c.bf16 %v243, %v214
    %v385 = vpack.c.bf16 %v301, %v272
    %v386 = vpack.c.bf16 %v359, %v330
    %v387 = vpack.c.bf16 %v188, %v159
    %v388 = vpack.c.bf16 %v246, %v217
    %v389 = vpack.c.bf16 %v304, %v275
    %v390 = vpack.c.bf16 %v362, %v333
    %v391 = vpack.c.bf16 %v190, %v161
    %v392 = vpack.c.bf16 %v248, %v219
    %v393 = vpack.c.bf16 %v306, %v277
    %v394 = vpack.c.bf16 %v364, %v335
    %v395 = vpack.c.bf16 %v193, %v164
    %v396 = vpack.c.bf16 %v251, %v222
    %v397 = vpack.c.bf16 %v309, %v280
    %v398 = vpack.c.bf16 %v367, %v338
    %v399 = vpack.c.bf16 %v195, %v166
    %v400 = vpack.c.bf16 %v253, %v224
    %v401 = vpack.c.bf16 %v311, %v282
    %v402 = vpack.c.bf16 %v369, %v340
    %403 = vst [vmem:[#allocation5] sm:$0xff] %v371
    %404 = vst [vmem:[#allocation5 + $0x8] sm:$0xff] %v372
    %405 = vst [vmem:[#allocation5 + $0x10] sm:$0xff] %v373
    %406 = vst [vmem:[#allocation5 + $0x18] sm:$0xff] %v374
    %407 = vst [vmem:[#allocation5 + $0x20] sm:$0xff] %v375
    %408 = vst [vmem:[#allocation5 + $0x28] sm:$0xff] %v376
    %409 = vst [vmem:[#allocation5 + $0x30] sm:$0xff] %v377
    %410 = vst [vmem:[#allocation5 + $0x38] sm:$0xff] %v378
    %411 = vst [vmem:[#allocation5 + $0x40] sm:$0xff] %v379
    %412 = vst [vmem:[#allocation5 + $0x48] sm:$0xff] %v380
    %413 = vst [vmem:[#allocation5 + $0x50] sm:$0xff] %v381
    %414 = vst [vmem:[#allocation5 + $0x58] sm:$0xff] %v382
    %415 = vst [vmem:[#allocation5 + $0x60] sm:$0xff] %v383
    %416 = vst [vmem:[#allocation5 + $0x68] sm:$0xff] %v384
    %417 = vst [vmem:[#allocation5 + $0x70] sm:$0xff] %v385
    %418 = vst [vmem:[#allocation5 + $0x78] sm:$0xff] %v386
    %419 = vst [vmem:[#allocation5 + $0x80] sm:$0xff] %v387
    %420 = vst [vmem:[#allocation5 + $0x88] sm:$0xff] %v388
    %421 = vst [vmem:[#allocation5 + $0x90] sm:$0xff] %v389
    %422 = vst [vmem:[#allocation5 + $0x98] sm:$0xff] %v390
    %423 = vst [vmem:[#allocation5 + $0xa0] sm:$0xff] %v391
    %424 = vst [vmem:[#allocation5 + $0xa8] sm:$0xff] %v392
    %425 = vst [vmem:[#allocation5 + $0xb0] sm:$0xff] %v393
    %426 = vst [vmem:[#allocation5 + $0xb8] sm:$0xff] %v394
    %427 = vst [vmem:[#allocation5 + $0xc0] sm:$0xff] %v395
    %428 = vst [vmem:[#allocation5 + $0xc8] sm:$0xff] %v396
    %429 = vst [vmem:[#allocation5 + $0xd0] sm:$0xff] %v397
    %430 = vst [vmem:[#allocation5 + $0xd8] sm:$0xff] %v398
    %431 = vst [vmem:[#allocation5 + $0xe0] sm:$0xff] %v399
    %432 = vst [vmem:[#allocation5 + $0xe8] sm:$0xff] %v400
    %433 = vst [vmem:[#allocation5 + $0xf0] sm:$0xff] %v401
    %434 = vst [vmem:[#allocation5 + $0xf8] sm:$0xff] %v402
    // Predicated region
    $region18: #{tpu_custom_call.1} parent=1 // pred_check
      _
    $region19: #{tpu_custom_call.1} parent=1 // pred_check_branch
      %436 = sbr.rel (0) target = $region21
    $region20: #{tpu_custom_call.1} parent=1 // pred_region
      %438 = vsyncadd [#allocation4], 0
      %s439 = sshll.u32 [#allocation5], 4
      %s440 = int_to_ptr.vmem [resolvable:$true] %s439
      %s441 = sshll.u32 %s3, 4
      %s442 = int_to_ptr.hbm [resolvable:$true] %s441
      %447 = dma.vmem_to_hbm [thread:$0]  %s440, 4096, %s442, [#allocation4], 512, 512, 32
    $region21: #{tpu_custom_call.1} parent=1 // pred_fallthru
      _
    // Predicated region
    $region22: #{tpu_custom_call.1} parent=1 // pred_check
      _
    $region23: #{tpu_custom_call.1} parent=1 // pred_check_branch
      %449 = sbr.rel (0) target = $region25
    $region24: #{tpu_custom_call.1} parent=1 // pred_region
      %451 = dma.done [#allocation4], 4096
    $region25: #{tpu_custom_call.1} parent=1 // pred_fallthru
      _
    %452 = vsyncpa [#allocation3], 1
    %453 = vsyncpa [#allocation4], 1

</llo_original>
